<compile_context>
chip_gen: v5e
topology: v5e:2x2
jax: 0.10.0
libtpu: 0.0.40
codegen_flags: <defaults>
</compile_context>

<pallas_src>
import math

import jax
import jax.numpy as jnp
from jax.experimental import pallas as pl
from jax.experimental.pallas import tpu as pltpu


def _pos_enc_kernel(noise_ref, out_ref):
    # noise_ref: (TB, 1) in VMEM, out_ref: (TB, dim) in VMEM
    _, dim = out_ref.shape
    count = dim // 2

    # Per-column constants, computed ONCE on a (1, dim) row in f32.
    col = jax.lax.broadcasted_iota(jnp.int32, (1, dim), 1)          # (1, dim)
    j = jnp.where(col < count, col, col - count)                    # col % count
    step = j.astype(jnp.float32) * jnp.float32(1.0 / count)         # (1, dim)
    scale = jnp.exp(jnp.float32(-math.log(10000.0)) * step)         # (1, dim)
    # cos half realized as a pi/2 phase shift: cos(x) = sin(x + pi/2)
    phase = jnp.where(col < count, jnp.float32(0.0), jnp.float32(math.pi / 2.0))

    nl = noise_ref[...].astype(jnp.float32)                          # (TB, 1)
    out = jnp.sin(nl * scale + phase)                                # (TB, dim)
    out_ref[...] = out.astype(out_ref.dtype)


def positional_encoding(noise_level: jax.Array, dim: int, block_b: int = 1024) -> jax.Array:
    """Pallas equivalent of PositionalEncoding(dim)(noise_level)."""
    assert dim % 2 == 0, "dim must be even"

    # noise_level.view(-1).unsqueeze(1)
    nl = jnp.reshape(noise_level, (-1, 1))
    b = nl.shape[0]
    out_dtype = nl.dtype

    if b <= block_b:
        # Single tile covering the whole batch (full-array block is always legal).
        tb = b
        b_pad = b
    else:
        # Batch-tiled, double-buffered pipeline; tb is a multiple of 8.
        tb = block_b
        b_pad = pl.cdiv(b, tb) * tb
        if b_pad != b:
            nl = jnp.pad(nl, ((0, b_pad - b), (0, 0)))

    grid = (b_pad // tb,)

    itemsize = jnp.dtype(out_dtype).itemsize
    cost = pl.CostEstimate(
        flops=8 * b_pad * dim,                       # mul/add/select + poly work
        transcendentals=b_pad * dim + grid[0] * dim,  # sin sweep + per-tile exp row
        bytes_accessed=b_pad * (dim + 1) * itemsize,
    )

    out = pl.pallas_call(
        _pos_enc_kernel,
        out_shape=jax.ShapeDtypeStruct((b_pad, dim), out_dtype),
        grid=grid,
        in_specs=[pl.BlockSpec((tb, 1), lambda i: (i, 0))],
        out_specs=pl.BlockSpec((tb, dim), lambda i: (i, 0)),
        compiler_params=pltpu.CompilerParams(dimension_semantics=("parallel",)),
        cost_estimate=cost,
    )(nl)

    if b_pad != b:
        out = out[:b]
    return out


def _reference(noise_level: jax.Array, dim: int) -> jax.Array:
    nl = jnp.reshape(noise_level, (-1,))
    count = dim // 2
    step = jnp.arange(count, dtype=jnp.float32) / count
    enc = nl.astype(jnp.float32)[:, None] * jnp.exp(-math.log(10000.0) * step[None, :])
    ref = jnp.concatenate([jnp.sin(enc), jnp.cos(enc)], axis=-1)
    return ref.astype(noise_level.dtype)


if __name__ == "__main__":
    key = jax.random.PRNGKey(0)

    # Small demo shape matching DeScoD usage: one noise scalar per batch element.
    batch = 8
    dim = 32
    noise_level = jax.random.uniform(
        key, (batch,), dtype=jnp.float32, minval=0.0, maxval=1.0
    )

    out = positional_encoding(noise_level, dim)
    out = jax.block_until_ready(out)

    ref = _reference(noise_level, dim)
    assert out.shape == (batch, dim), out.shape
    assert jnp.allclose(out, ref, atol=1e-5, rtol=1e-5), "mismatch vs reference (small)"

    # Exercise the batch-tiled / padded pipeline path as well.
    key2 = jax.random.PRNGKey(0)
    batch2, dim2 = 2052, 64  # not a multiple of the tile -> padding + slicing path
    noise2 = jax.random.uniform(key2, (batch2,), dtype=jnp.float32)
    out2 = jax.block_until_ready(positional_encoding(noise2, dim2, block_b=512))
    ref2 = _reference(noise2, dim2)
    assert out2.shape == (batch2, dim2), out2.shape
    assert jnp.allclose(out2, ref2, atol=1e-5, rtol=1e-5), "mismatch vs reference (tiled)"

    print("KERNEL_OK")
</pallas_src>

<mosaic_0001>
module attributes {stable_mosaic.version = 11 : i64} {
  func.func @_pos_enc_kernel(%arg0: i32, %arg1: memref<8x1xf32, #tpu.memory_space<vmem>>, %arg2: memref<8x32xf32, #tpu.memory_space<vmem>>) attributes {dimension_semantics = [#tpu.dimension_semantics<parallel>], iteration_bounds = array<i64: 1>, scalar_prefetch = 0 : i64, scratch_operands = 0 : i64, tpu.core_type = #tpu.core_type<tc>, window_params = [{transform_indices = @transform_0, window_bounds = array<i64: 8, 1>}, {transform_indices = @transform_1, window_bounds = array<i64: 8, 32>}]} {
    %0 = tpu.iota {dimensions = array<i32: 1>} : vector<1x32xi32>
    %c16_i32 = arith.constant 16 : i32
    %1 = vector.broadcast %c16_i32 : i32 to vector<1x32xi32>
    %2 = arith.cmpi slt, %0, %1 : vector<1x32xi32>
    %c16_i32_0 = arith.constant 16 : i32
    %3 = vector.broadcast %c16_i32_0 : i32 to vector<1x32xi32>
    %4 = arith.subi %0, %3 : vector<1x32xi32>
    %5 = arith.select %2, %0, %4 : vector<1x32xi1>, vector<1x32xi32>
    %6 = arith.sitofp %5 : vector<1x32xi32> to vector<1x32xf32>
    %cst = arith.constant 6.250000e-02 : f32
    %7 = vector.broadcast %cst : f32 to vector<1x32xf32>
    %8 = arith.mulf %6, %7 : vector<1x32xf32>
    %cst_1 = arith.constant -9.21034049 : f32
    %9 = vector.broadcast %cst_1 : f32 to vector<1x32xf32>
    %10 = arith.mulf %9, %8 : vector<1x32xf32>
    %11 = math.exp %10 : vector<1x32xf32>
    %c16_i32_2 = arith.constant 16 : i32
    %12 = vector.broadcast %c16_i32_2 : i32 to vector<1x32xi32>
    %13 = arith.cmpi slt, %0, %12 : vector<1x32xi32>
    %cst_3 = arith.constant 0.000000e+00 : f32
    %cst_4 = arith.constant 1.57079637 : f32
    %14 = vector.broadcast %cst_3 : f32 to vector<1x32xf32>
    %15 = vector.broadcast %cst_4 : f32 to vector<1x32xf32>
    %16 = arith.select %13, %14, %15 : vector<1x32xi1>, vector<1x32xf32>
    %c0 = arith.constant 0 : index
    %c0_5 = arith.constant 0 : index
    %17 = vector.load %arg1[%c0, %c0_5] : memref<8x1xf32, #tpu.memory_space<vmem>>, vector<8x1xf32>
    %18 = vector.broadcast %17 : vector<8x1xf32> to vector<8x32xf32>
    %19 = vector.broadcast %11 : vector<1x32xf32> to vector<8x32xf32>
    %20 = arith.mulf %18, %19 : vector<8x32xf32>
    %21 = vector.broadcast %16 : vector<1x32xf32> to vector<8x32xf32>
    %22 = arith.addf %20, %21 : vector<8x32xf32>
    %23 = math.sin %22 : vector<8x32xf32>
    %c0_6 = arith.constant 0 : index
    %c0_7 = arith.constant 0 : index
    %24 = vector.load %arg2[%c0_6, %c0_7] : memref<8x32xf32, #tpu.memory_space<vmem>>, vector<8x32xf32>
    tpu.vector_store %arg2[%c0_6, %c0_7], %23 {strides = array<i32>} : memref<8x32xf32, #tpu.memory_space<vmem>>, vector<8x32xf32>,
    return
  }
  func.func @transform_0(%arg0: i32) -> (i32, i32) {
    %c0_i32 = arith.constant 0 : i32
    %c0_i32_0 = arith.constant 0 : i32
    return %arg0, %c0_i32 : i32, i32
  }
  func.func @transform_1(%arg0: i32) -> (i32, i32) {
    %c0_i32 = arith.constant 0 : i32
    %c0_i32_0 = arith.constant 0 : i32
    return %arg0, %c0_i32 : i32, i32
  }
}

</mosaic_0001>

<llo_original>
// kernel: tpu_custom_call.1
$region0: #{tpu_custom_call.1}
  #allocation0 [shape = 'u32[]', space=smem, size = 0x4, offset = 0x4, fixed_abs, tag = 'smem constant byte address 0x4 - core index']
  #allocation1 [shape = 'u32[72,128]{1,0:T(1,128)}', space=vmem, size = 0x9000, scoped, tag = 'internal scratch']
  %s0 = inlined_call_operand.vmem [shape: f32[8,1], index: 0, kind: input, shape index: {}]
  %s1 = inlined_call_operand.hbm [shape: f32[8,32], index: 1, kind: output, shape index: {}]
  %s2 = sld [smem:[#allocation0]]
  $region14: #{tpu_custom_call.1} parent=0
    _
  %s4 = ssub.s32 1, %s2
  %s5 = scalar_select 0, %s4, %s2
  $region1: #{tpu_custom_call.1} parent=0
    #allocation2 [shape = 'u8[4096]{0}', space=vmem, size = 0x1000, scoped, tag = 'output window, operand 0, single buffered']
    #allocation3 [shape = 's32[1]{0}', space=sflag, size = 0x4, scoped, tag = 'scoped memory for tpu_custom_call.1']
    %6 = vsyncpa [#allocation3], 0
    // Predicated region
    $region2: #{tpu_custom_call.1} parent=1 // pred_check
      _
    $region3: #{tpu_custom_call.1} parent=1 // pred_check_branch
      %8 = sbr.rel (0) target = $region5
    $region4: #{tpu_custom_call.1} parent=1 // pred_region
      _
    $region5: #{tpu_custom_call.1} parent=1 // pred_fallthru
      _
    %v9 = vlaneseq
    %v10 = vand.u32 %v9, 127
    %vm11 = vcmp.lt.s32.totalorder %v10, 16
    %v12 = vsub.s32 %v10, 16
    %v13 = vsel %vm11, %v10, %v12
    %v14 = vcvt.s32.f32 %v13
    %v15 = vmul.f32 %v14, 0.0625
    %v16 = vmul.f32 %v15, -9.2103405
    %v17 = vmul.f32 %v16, 1.442695
    %v18 = vpow.pop %v17
    %v19 = vsel %vm11, 0.0, 1.5707964
    %v20 = vld [vmem:[%s0] sm:$0xff]
    %22 = vset.pattern.permute.xlu0 0
    %23 = vperm.xlu0 %22, %v20
    %v24 = vpop.permute.xlu0 %23
    %v26 = vmul.f32 %v24, %v18
    %v27 = vadd.f32 %v26, %v19
    %v28 = vand.u32 2147483647, %v27
    %vm29 = vcmp.le.f32.partialorder %v28, 0.7853982
    %vm30 = vcmp.lt.s32.totalorder %v27, 0
    %v31 = vand.u32 %v27, 2139095040
    %v32 = vshrl.u32 %v31, 23
    %v33 = vsub.s32 %v32, 127
    %v34 = vand.u32 2147483647, %v27
    %v35 = vand.u32 %v34, 8388607
    %v36 = vor.u32 %v35, 8388608
    %v37 = vsub.s32 0, %v36
    %v38 = vadd.s32 %v33, 1
    %vm39 = vcmp.gt.s32.totalorder %v38, 0
    %v40 = vsel %vm39, %v38, 0
    %v41 = vshrl.u32 %v40, 5
    %v42 = vand.u32 %v40, 31
    %v43 = vsub.s32 32, %v42
    %v44 = vshrl.u32 683565275, %v43
    %v45 = vshll.u32 683565275, %v42
    %v46 = vshrl.u32 2475754826, %v43
    %v47 = vor.u32 %v45, %v46
    %v48 = vshll.u32 2475754826, %v42
    %v49 = vshrl.u32 2131351028, %v43
    %v50 = vor.u32 %v48, %v49
    %v51 = vshll.u32 2131351028, %v42
    %v52 = vshrl.u32 2102212464, %v43
    %v53 = vor.u32 %v51, %v52
    %v54 = vshll.u32 2102212464, %v42
    %v55 = vshrl.u32 920167782, %v43
    %v56 = vor.u32 %v54, %v55
    %v57 = vshll.u32 920167782, %v42
    %v58 = vshrl.u32 1326507024, %v43
    %v59 = vor.u32 %v57, %v58
    %vm60 = vcmp.lt.s32.totalorder %v41, 1
    %vm61 = vcmp.lt.s32.totalorder %v41, 2
    %vm62 = vcmp.lt.s32.totalorder %v41, 3
    %vm63 = vcmp.lt.s32.totalorder %v41, 4
    %v64 = vsel %vm60, %v44, %v47
    %v65 = vsel %vm63, %v53, 2102212464
    %v66 = vsel %vm62, %v50, %v65
    %v67 = vsel %vm61, %v64, %v66
    %v68 = vsel %vm60, %v47, %v50
    %v69 = vsel %vm63, %v56, 920167782
    %v70 = vsel %vm62, %v53, %v69
    %v71 = vsel %vm61, %v68, %v70
    %v72 = vsel %vm60, %v50, %v53
    %v73 = vsel %vm63, %v59, 1326507024
    %v74 = vsel %vm62, %v56, %v73
    %v75 = vsel %vm61, %v72, %v74
    %v76 = vshll.u32 %v36, 8
    %v77 = vand.u32 %v76, 65535
    %v78 = vshrl.u32 %v76, 16
    %v79 = vand.u32 %v75, 65535
    %v80 = vshrl.u32 %v75, 16
    %v81 = vmul.u32 %v77, %v79
    %v82 = vmul.u32 %v77, %v80
    %v83 = vmul.u32 %v78, %v79
    %v84 = vmul.u32 %v78, %v80
    %v85 = vshll.u32 %v82, 16
    %v86 = vshrl.u32 %v82, 16
    %v87 = vshll.u32 %v83, 16
    %v88 = vshrl.u32 %v83, 16
    %vm89 = vc.u32 %v81, %v85
    %v90 = vsel %vm89, 1, 0
    %v91 = vadd.s32 %v81, %v85
    %v92 = vadd.s32 %v84, %v90
    %vm93 = vc.u32 %v91, %v87
    %v94 = vsel %vm93, 1, 0
    %v95 = vadd.s32 %v91, %v87
    %v96 = vadd.s32 %v92, %v94
    %v97 = vadd.s32 %v96, %v86
    %v98 = vadd.s32 %v97, %v88
    %v99 = vand.u32 %v76, 65535
    %v100 = vshrl.u32 %v76, 16
    %v101 = vand.u32 %v71, 65535
    %v102 = vshrl.u32 %v71, 16
    %v103 = vmul.u32 %v99, %v101
    %v104 = vmul.u32 %v99, %v102
    %v105 = vmul.u32 %v100, %v101
    %v106 = vmul.u32 %v100, %v102
    %v107 = vshll.u32 %v104, 16
    %v108 = vshrl.u32 %v104, 16
    %v109 = vshll.u32 %v105, 16
    %v110 = vshrl.u32 %v105, 16
    %vm111 = vc.u32 %v103, %v107
    %v112 = vsel %vm111, 1, 0
    %v113 = vadd.s32 %v103, %v107
    %v114 = vadd.s32 %v106, %v112
    %vm115 = vc.u32 %v113, %v109
    %v116 = vsel %vm115, 1, 0
    %v117 = vadd.s32 %v113, %v109
    %v118 = vadd.s32 %v114, %v116
    %v119 = vadd.s32 %v118, %v108
    %v120 = vadd.s32 %v119, %v110
    %v121 = vmul.u32 %v76, %v67
    %v122 = vadd.s32 %v98, %v117
    %vm123 = vc.u32 %v98, %v117
    %v124 = vadd.s32 %v120, 1
    %v125 = vsel %vm123, %v124, %v120
    %v126 = vadd.s32 %v121, %v125
    %v127 = vadd.s32 %v126, 536870912
    %v128 = vshrl.u32 %v127, 30
    %v129 = vshll.u32 %v128, 30
    %v130 = vsub.s32 %v126, %v129
    %vm131 = vcmp.lt.s32.totalorder %v130, 0
    %v132 = vsub.s32 0, %v130
    %v133 = vsel %vm131, %v132, %v130
    %v134 = vclz %v133
    %v135 = vsub.s32 %v134, 2
    %vm136 = vcmp.gt.s32.totalorder 0, %v135
    %v137 = vsel %vm136, 0, %v135
    %v138 = vsub.s32 32, %v137
    %v139 = vshll.u32 %v130, %v137
    %v140 = vshrl.u32 %v122, %v138
    %v141 = vor.u32 %v139, %v140
    %v142 = vsub.s32 4294967266, %v137
    %v143 = vadd.s32 %v142, 127
    %v144 = vshll.u32 %v143, 23
    %v145 = vor.u32 4788187, %v144
    %v146 = vand.u32 2147483647, %v145
    %v148 = vcvt.s32.f32 %v141
    %v149 = vmul.f32 %v148, %v146
    %v150 = vxor.u32 %v149, 2147483648
    %v151 = vsel %vm30, %v150, %v149
    %v152 = vsub.s32 4, %v128
    %v153 = vsel %vm30, %v152, %v128
    %v154 = vsel %vm29, %v27, %v151
    %v155 = vsel %vm29, 0, %v153
    %v156 = vmul.f32 %v154, %v154
    %v157 = vmul.f32 %v156, -0.001358992
    %v158 = vadd.f32 %v157, 0.041655596
    %v159 = vmul.f32 %v156, %v158
    %v160 = vadd.f32 %v159, -0.4999988
    %v161 = vmul.f32 %v156, %v160
    %v162 = vadd.f32 1.0, %v161
    %v163 = vmul.f32 %v154, %v154
    %v164 = vmul.f32 %v163, -0.00019511016
    %v165 = vadd.f32 %v164, 0.008332121
    %v166 = vmul.f32 %v163, %v165
    %v167 = vadd.f32 %v166, -0.16666654
    %v168 = vmul.f32 %v163, %v167
    %v169 = vadd.f32 %v168, 1.0
    %v170 = vmul.f32 %v169, %v154
    %vm171 = vweird.f32 %v27
    %v172 = vadd.s32 %v155, 3
    %v173 = vand.u32 %v172, 3
    %vm174 = vcmp.lt.s32.totalorder %v173, 2
    %vm175 = vcmp.eq.s32.totalorder %v173, 0
    %v176 = vxor.u32 %v170, 2147483648
    %v177 = vsel %vm175, %v162, %v176
    %vm178 = vcmp.eq.s32.totalorder %v173, 2
    %v179 = vxor.u32 %v162, 2147483648
    %v180 = vsel %vm178, %v179, %v170
    %v181 = vsel %vm174, %v177, %v180
    %v182 = vsel %vm171, nan, %v181
    %vm183 = vcmask 261120
    %184 = vst.msk [vmem:[#allocation2] sm:$0xff] %vm183, %v182
    // Predicated region
    $region6: #{tpu_custom_call.1} parent=1 // pred_check
      _
    $region7: #{tpu_custom_call.1} parent=1 // pred_check_branch
      %186 = sbr.rel (0) target = $region9
    $region8: #{tpu_custom_call.1} parent=1 // pred_region
      %188 = vsyncadd [#allocation3], 0
      %s190 = sshll.u32 [#allocation2], 4
      %s191 = int_to_ptr.vmem [resolvable:$true] %s190
      %s192 = sshll.u32 %s1, 4
      %s193 = int_to_ptr.hbm [resolvable:$true] %s192
      %195 = dma.vmem_to_hbm [thread:$0]  %s191, 128, %s193, [#allocation3]
    $region9: #{tpu_custom_call.1} parent=1 // pred_fallthru
      _
    // Predicated region
    $region10: #{tpu_custom_call.1} parent=1 // pred_check
      _
    $region11: #{tpu_custom_call.1} parent=1 // pred_check_branch
      %197 = sbr.rel (0) target = $region13
    $region12: #{tpu_custom_call.1} parent=1 // pred_region
      %199 = dma.done [#allocation3], 128
    $region13: #{tpu_custom_call.1} parent=1 // pred_fallthru
      _
    %200 = vsyncpa [#allocation3], 1

</llo_original>
